<compile_context>
chip_gen: v7x
topology: tpu7x:2x2x1
jax: 0.10.0
libtpu: 0.0.40
codegen_flags: <defaults>
</compile_context>

<pallas_src>
import jax
import jax.numpy as jnp
from jax.experimental import pallas as pl
from jax.experimental.pallas import tpu as pltpu


_LANES = 512                         # lane-dense last dim (multiple of 128)
_MAX_BLOCK_BYTES = 2 * 1024 * 1024   # ~2 MiB / block: safe on v5e/v6e/v7x with
                                     # double-buffered input + output


def _identity_kernel(x_ref, o_ref):
    # Pure elementwise copy of the current VMEM tile.
    o_ref[...] = x_ref[...]


def _sublane_pack(dtype) -> int:
    # Sublane packing: 8 for 32-bit, 16 for 16-bit, 32 for 8-bit dtypes.
    itemsize = jnp.dtype(dtype).itemsize
    return max(8, 32 // max(itemsize, 1))


def identity(x: jax.Array) -> jax.Array:
    """Identity forward pass implemented as a Pallas TPU kernel.

    Accepts any shape/dtype; internally flattens to a lane-dense 2D slab,
    pads up to full (sublane x lane) aligned blocks, streams the tiles
    HBM -> VMEM -> HBM, then slices/reshapes back to the original shape.
    (The truly optimal implementation is `return x`; the kernel is kept so
    the op exercises the Pallas copy path with aliased output buffers.)
    """
    orig_shape = x.shape
    orig_dtype = x.dtype
    total = x.size

    if total == 0:
        return x

    itemsize = jnp.dtype(orig_dtype).itemsize
    sub = _sublane_pack(orig_dtype)

    lanes = _LANES
    rows = pl.cdiv(total, lanes)

    # tile_rows: multiple of the sublane packing, capped so one block stays
    # <= _MAX_BLOCK_BYTES.
    max_tile_rows = max(sub, (_MAX_BLOCK_BYTES // (lanes * itemsize)) // sub * sub)
    rows_aligned = ((rows + sub - 1) // sub) * sub
    tile_rows = min(max_tile_rows, rows_aligned)

    # Pad rows to an exact multiple of tile_rows: every grid step sees a full,
    # unmasked (tile_rows, lanes) block.
    padded_rows = ((rows + tile_rows - 1) // tile_rows) * tile_rows
    padded_total = padded_rows * lanes

    flat = x.reshape(-1)
    if padded_total != total:
        flat = jnp.pad(flat, (0, padded_total - total))
    x2 = flat.reshape(padded_rows, lanes)

    grid = (padded_rows // tile_rows,)

    out2 = pl.pallas_call(
        _identity_kernel,
        out_shape=jax.ShapeDtypeStruct((padded_rows, lanes), orig_dtype),
        grid=grid,
        in_specs=[pl.BlockSpec((tile_rows, lanes), lambda i: (i, 0))],
        out_specs=pl.BlockSpec((tile_rows, lanes), lambda i: (i, 0)),
        # Output aliases the (intermediate) input buffer: no extra HBM
        # allocation for the copy target.
        input_output_aliases={0: 0},
        compiler_params=pltpu.CompilerParams(
            dimension_semantics=("parallel",),
        ),
    )(x2)

    out_flat = out2.reshape(-1)
    if padded_total != total:
        out_flat = out_flat[:total]
    return out_flat.reshape(orig_shape)


if __name__ == "__main__":
    key = jax.random.PRNGKey(0)
    # Small NCHW input consistent with a ResNet-style encoder feature map.
    x = jax.random.normal(key, (2, 4, 16, 16), dtype=jnp.float32)

    y = identity(x)
    jax.block_until_ready(y)

    assert y.shape == x.shape and y.dtype == x.dtype
    assert bool(jnp.all(y == x))
    print("KERNEL_OK")
</pallas_src>

<mosaic_0001>
module attributes {stable_mosaic.version = 11 : i64} {
  func.func @_identity_kernel(%arg0: i32, %arg1: memref<8x512xf32, #tpu.memory_space<vmem>>, %arg2: memref<8x512xf32, #tpu.memory_space<vmem>>) attributes {dimension_semantics = [#tpu.dimension_semantics<parallel>], iteration_bounds = array<i64: 1>, scalar_prefetch = 0 : i64, scratch_operands = 0 : i64, tpu.core_type = #tpu.core_type<tc>, window_params = [{transform_indices = @transform_0, window_bounds = array<i64: 8, 512>}, {transform_indices = @transform_1, window_bounds = array<i64: 8, 512>}]} {
    %c0 = arith.constant 0 : index
    %c0_0 = arith.constant 0 : index
    %0 = vector.load %arg1[%c0, %c0_0] : memref<8x512xf32, #tpu.memory_space<vmem>>, vector<8x512xf32>
    %c0_1 = arith.constant 0 : index
    %c0_2 = arith.constant 0 : index
    %1 = vector.load %arg2[%c0_1, %c0_2] : memref<8x512xf32, #tpu.memory_space<vmem>>, vector<8x512xf32>
    tpu.vector_store %arg2[%c0_1, %c0_2], %0 {strides = array<i32>} : memref<8x512xf32, #tpu.memory_space<vmem>>, vector<8x512xf32>,
    return
  }
  func.func @transform_0(%arg0: i32) -> (i32, i32) {
    %c0_i32 = arith.constant 0 : i32
    %c0_i32_0 = arith.constant 0 : i32
    return %arg0, %c0_i32 : i32, i32
  }
  func.func @transform_1(%arg0: i32) -> (i32, i32) {
    %c0_i32 = arith.constant 0 : i32
    %c0_i32_0 = arith.constant 0 : i32
    return %arg0, %c0_i32 : i32, i32
  }
}

</mosaic_0001>

<llo_original>
// kernel: tpu_custom_call.1
$region0: #{tpu_custom_call.1}
  #allocation0 [shape = 'u32[]', space=smem, size = 0x4, offset = 0x4, fixed_abs, tag = 'smem constant byte address 0x4 - core index']
  #allocation1 [shape = 'u32[144,128]{1,0:T(1,128)}', space=vmem, size = 0x12000, scoped, tag = 'internal scratch']
  %s0 = inlined_call_operand.hbm [shape: f32[8,512], index: 0, kind: input, shape index: {}, may-alias: {0,1}]
  %s1 = inlined_call_operand.hbm [shape: f32[8,512], index: 1, kind: output, shape index: {}, may-alias: {0,1}]
  %s2 = sld [smem:[#allocation0]]
  $region18: #{tpu_custom_call.1} parent=0
    _
  %s4 = ssub.s32 1, %s2
  %s5 = scalar_select 0, %s4, %s2
  $region1: #{tpu_custom_call.1} parent=0
    #allocation2 [shape = 'u8[16384]{0}', space=vmem, size = 0x4000, scoped, tag = 'input window, operand 0, single buffered']
    #allocation3 [shape = 's32[1]{0}', space=sflag, size = 0x4, scoped, tag = 'scoped memory for tpu_custom_call.1']
    #allocation4 [shape = 's32[1]{0}', space=sflag, size = 0x4, scoped, tag = 'scoped memory for tpu_custom_call.1']
    #allocation5 [shape = 'u8[16384]{0}', space=vmem, size = 0x4000, scoped, tag = 'output window, operand 0, single buffered']
    %6 = vsyncpa [#allocation3], 0
    %7 = vsyncpa [#allocation4], 0
    // Predicated region
    $region2: #{tpu_custom_call.1} parent=1 // pred_check
      _
    $region3: #{tpu_custom_call.1} parent=1 // pred_check_branch
      %9 = sbr.rel (0) target = $region5
    $region4: #{tpu_custom_call.1} parent=1 // pred_region
      %s11 = ssub.s32 512, 512
      %12 = vsyncadd [#allocation3], %s11
      %s14 = sshll.u32 [#allocation2], 4
      %s15 = int_to_ptr.vmem [resolvable:$true] %s14
      %17 = dma.hbm_to_vmem [thread:$0]  %s0, 512, %s15, [#allocation3]
    $region5: #{tpu_custom_call.1} parent=1 // pred_fallthru
      _
    // Predicated region
    $region6: #{tpu_custom_call.1} parent=1 // pred_check
      _
    $region7: #{tpu_custom_call.1} parent=1 // pred_check_branch
      %19 = sbr.rel (0) target = $region9
    $region8: #{tpu_custom_call.1} parent=1 // pred_region
      %20 = dma.done [#allocation3], 512
    $region9: #{tpu_custom_call.1} parent=1 // pred_fallthru
      _
    %v21 = vld [vmem:[#allocation2] sm:$0xff]
    %v22 = vld [vmem:[#allocation2 + $0x8] sm:$0xff]
    %v23 = vld [vmem:[#allocation2 + $0x10] sm:$0xff]
    %v24 = vld [vmem:[#allocation2 + $0x18] sm:$0xff]
    %25 = vst [vmem:[#allocation5] sm:$0xff] %v21
    %26 = vst [vmem:[#allocation5 + $0x8] sm:$0xff] %v22
    %27 = vst [vmem:[#allocation5 + $0x10] sm:$0xff] %v23
    %28 = vst [vmem:[#allocation5 + $0x18] sm:$0xff] %v24
    // Predicated region
    $region10: #{tpu_custom_call.1} parent=1 // pred_check
      _
    $region11: #{tpu_custom_call.1} parent=1 // pred_check_branch
      %30 = sbr.rel (0) target = $region13
    $region12: #{tpu_custom_call.1} parent=1 // pred_region
      %s32 = ssub.s32 512, 512
      %33 = vsyncadd [#allocation4], %s32
      %s35 = sshll.u32 [#allocation5], 4
      %s36 = int_to_ptr.vmem [resolvable:$true] %s35
      %38 = dma.vmem_to_hbm [thread:$0]  %s36, 512, %s1, [#allocation4]
    $region13: #{tpu_custom_call.1} parent=1 // pred_fallthru
      _
    // Predicated region
    $region14: #{tpu_custom_call.1} parent=1 // pred_check
      _
    $region15: #{tpu_custom_call.1} parent=1 // pred_check_branch
      %40 = sbr.rel (0) target = $region17
    $region16: #{tpu_custom_call.1} parent=1 // pred_region
      %41 = dma.done [#allocation4], 512
    $region17: #{tpu_custom_call.1} parent=1 // pred_fallthru
      _
    %42 = vsyncpa [#allocation3], 1
    %43 = vsyncpa [#allocation4], 1

</llo_original>
